<compile_context>
chip_gen: v6e
topology: v6e:2x2x1
jax: 0.10.0
libtpu: 0.0.40
codegen_flags: <defaults>
</compile_context>

<pallas_src>
import functools

import jax
import jax.numpy as jnp
from jax.experimental import pallas as pl
from jax.experimental.pallas import tpu as pltpu

BN_EPS = 1e-5
DEFAULT_TILE_M = 512                 # rows per grid step (HBM-pipelining sweet spot, fits v7x VMEM)
VMEM_LIMIT_BYTES = 32 * 1024 * 1024  # explicit scoped-VMEM budget (safe on v5e/v6e/v7x)


def _round_up(x, n):
    return ((x + n - 1) // n) * n


def _stats_kernel(x_ref, w1_ref, b1_ref, mean_ref, rstd_ref, *, tile_m, m_real, m_pad):
    """Phase 1: accumulate per-channel sum / sum-of-squares of h = x @ W1 + b1 (one pass)."""
    i = pl.program_id(0)

    @pl.when(i == 0)
    def _():
        mean_ref[...] = jnp.zeros_like(mean_ref)   # accumulates sum(h)
        rstd_ref[...] = jnp.zeros_like(rstd_ref)   # accumulates sum(h * h)

    # bf16 operands, f32 accumulation on the MXU.
    h = jnp.dot(x_ref[...], w1_ref[...], preferred_element_type=jnp.float32)
    h = h + b1_ref[...]                            # (tile_m, H) + (1, H), f32

    if m_real != m_pad:
        # Zero out rows that only exist because M was padded to a multiple of tile_m.
        row = jax.lax.broadcasted_iota(jnp.int32, (tile_m, 1), 0) + i * tile_m
        h = jnp.where(row < m_real, h, 0.0)

    mean_ref[...] += jnp.sum(h, axis=0, keepdims=True)
    rstd_ref[...] += jnp.sum(h * h, axis=0, keepdims=True)

    @pl.when(i == pl.num_programs(0) - 1)
    def _():
        inv_m = 1.0 / m_real
        mean = mean_ref[...] * inv_m
        var = jnp.maximum(rstd_ref[...] * inv_m - mean * mean, 0.0)  # biased var, clamp cancellation
        mean_ref[...] = mean
        rstd_ref[...] = jax.lax.rsqrt(var + BN_EPS)


def _decode_kernel(x_ref, w1_ref, b1_ref, mean_ref, rstd_ref, w2_ref, b2_ref, o_ref):
    """Phase 2: recompute h, BatchNorm (train-mode stats, gamma=1/beta=0), ReLU, second Linear."""
    h = jnp.dot(x_ref[...], w1_ref[...], preferred_element_type=jnp.float32)
    h = h + b1_ref[...]
    h = (h - mean_ref[...]) * rstd_ref[...]        # f32 BN math
    h = jnp.maximum(h, 0.0)                        # ReLU
    out = jnp.dot(h.astype(jnp.bfloat16), w2_ref[...], preferred_element_type=jnp.float32)
    o_ref[...] = out + b2_ref[...]


def vae_decoder_forward(x, w1_t, b1, w2_t, b2, *, tile_m=DEFAULT_TILE_M):
    """x: (bs, N, input_dim) -> logits (bs, N, output_dim). Matches PyTorch VAEDecoder.forward."""
    bs, N, m = x.shape
    H = w1_t.shape[1]
    D = w2_t.shape[1]
    M = bs * N

    x2d = x.reshape(M, m)

    # bf16 matmul operands; biases / stats stay f32.
    x_bf = x2d.astype(jnp.bfloat16)
    w1_bf = w1_t.astype(jnp.bfloat16)
    w2_bf = w2_t.astype(jnp.bfloat16)
    b1_2d = b1.reshape(1, H).astype(jnp.float32)
    b2_2d = b2.reshape(1, D).astype(jnp.float32)

    # Row tiling: tile must be a multiple of 8 sublanes; pad M up to a tile multiple.
    tm = min(tile_m, _round_up(M, 8))
    m_pad = _round_up(M, tm)
    if m_pad != M:
        x_bf = jnp.pad(x_bf, ((0, m_pad - M), (0, 0)))
    n_tiles = m_pad // tm

    full = lambda i: (0, 0)       # resident (weights, biases, stats)
    row_tile = lambda i: (i, 0)   # tiled along M

    # ---- phase 1: BN training statistics over all M rows ----
    stats_cost = pl.CostEstimate(
        flops=2 * m_pad * m * H + 4 * m_pad * H,
        transcendentals=0,
        bytes_accessed=m_pad * m * 2 + m * H * 2 + H * 4 + 2 * H * 4,
    )
    mean, rstd = pl.pallas_call(
        functools.partial(_stats_kernel, tile_m=tm, m_real=M, m_pad=m_pad),
        grid=(n_tiles,),
        in_specs=[
            pl.BlockSpec((tm, m), row_tile),   # x tile (bf16)
            pl.BlockSpec((m, H), full),        # W1^T   (bf16, resident)
            pl.BlockSpec((1, H), full),        # b1     (f32, resident)
        ],
        out_specs=[
            pl.BlockSpec((1, H), full),        # mean (accumulator -> finalized)
            pl.BlockSpec((1, H), full),        # rstd (accumulator -> finalized)
        ],
        out_shape=[
            jax.ShapeDtypeStruct((1, H), jnp.float32),
            jax.ShapeDtypeStruct((1, H), jnp.float32),
        ],
        compiler_params=pltpu.CompilerParams(
            dimension_semantics=("arbitrary",),          # reduction over row tiles
            vmem_limit_bytes=VMEM_LIMIT_BYTES,
        ),
        cost_estimate=stats_cost,
    )(x_bf, w1_bf, b1_2d)

    # ---- phase 2: normalize + ReLU + Linear(hidden -> output); row tiles independent ----
    decode_cost = pl.CostEstimate(
        flops=2 * m_pad * (m * H + H * D) + 4 * m_pad * H,
        transcendentals=0,
        bytes_accessed=(m_pad * m * 2 + m * H * 2 + H * D * 2 + m_pad * D * 4
                        + 3 * H * 4 + D * 4),
    )
    out2d = pl.pallas_call(
        _decode_kernel,
        grid=(n_tiles,),
        in_specs=[
            pl.BlockSpec((tm, m), row_tile),   # x tile (bf16)
            pl.BlockSpec((m, H), full),        # W1^T
            pl.BlockSpec((1, H), full),        # b1
            pl.BlockSpec((1, H), full),        # mean
            pl.BlockSpec((1, H), full),        # rstd
            pl.BlockSpec((H, D), full),        # W2^T
            pl.BlockSpec((1, D), full),        # b2
        ],
        out_specs=pl.BlockSpec((tm, D), row_tile),
        out_shape=jax.ShapeDtypeStruct((m_pad, D), jnp.float32),
        compiler_params=pltpu.CompilerParams(
            dimension_semantics=("parallel",),           # megacore split on v7x
            vmem_limit_bytes=VMEM_LIMIT_BYTES,
        ),
        cost_estimate=decode_cost,
    )(x_bf, w1_bf, b1_2d, mean, rstd, w2_bf, b2_2d)

    return out2d[:M].reshape(bs, N, D)


def init_params(key, input_dim, hidden_dim, output_dim):
    """kaiming_normal_(fan_in, relu) weights, zero biases (matches _initialize_weights)."""
    k1, k2 = jax.random.split(key)
    std1 = (2.0 / input_dim) ** 0.5    # fan_in = input_dim
    std2 = (2.0 / hidden_dim) ** 0.5   # fan_in = hidden_dim
    # PyTorch stores Linear weight as (out, in); we keep the transposed (in, out) layout.
    w1_t = jax.random.normal(k1, (input_dim, hidden_dim), jnp.float32) * std1
    w2_t = jax.random.normal(k2, (hidden_dim, output_dim), jnp.float32) * std2
    b1 = jnp.zeros((hidden_dim,), jnp.float32)
    b2 = jnp.zeros((output_dim,), jnp.float32)
    return w1_t, b1, w2_t, b2


def reference_forward(x, w1_t, b1, w2_t, b2, matmul_dtype=jnp.float32):
    """Pure-JAX reference of the PyTorch forward (training-mode BatchNorm1d)."""
    bs, N, m = x.shape
    x2d = x.reshape(bs * N, m).astype(matmul_dtype)
    h = jnp.dot(x2d, w1_t.astype(matmul_dtype), preferred_element_type=jnp.float32) + b1
    mean = jnp.mean(h, axis=0, keepdims=True)
    var = jnp.mean((h - mean) ** 2, axis=0, keepdims=True)
    h = (h - mean) * jax.lax.rsqrt(var + BN_EPS)
    h = jnp.maximum(h, 0.0)
    out = jnp.dot(h.astype(matmul_dtype), w2_t.astype(matmul_dtype),
                  preferred_element_type=jnp.float32) + b2
    return out.reshape(bs, N, -1)


if __name__ == "__main__":
    # Small shapes consistent with the module: latent dim m, lane-dense hidden dim, image d*d.
    bs, N = 2, 8
    input_dim, hidden_dim, output_dim = 32, 128, 256   # d = 16 -> d*d = 256

    key = jax.random.PRNGKey(0)
    kx, kp = jax.random.split(key)
    x = jax.random.normal(kx, (bs, N, input_dim), jnp.float32)
    w1_t, b1, w2_t, b2 = init_params(kp, input_dim, hidden_dim, output_dim)

    out = vae_decoder_forward(x, w1_t, b1, w2_t, b2)
    out = jax.block_until_ready(out)
    assert out.shape == (bs, N, output_dim)

    # Compare against a matching mixed-precision (bf16 matmul / f32 stats) JAX reference.
    ref = reference_forward(x, w1_t, b1, w2_t, b2, matmul_dtype=jnp.bfloat16)
    assert jnp.allclose(out, ref, atol=5e-3, rtol=5e-3), "mismatch vs reference"

    # TODO(synk): kernel does not update BatchNorm running_mean/running_var (not needed for
    # the forward pass itself, only for a later eval-mode module).

    print("KERNEL_OK")
</pallas_src>

<mosaic_0001>
module attributes {stable_mosaic.version = 11 : i64} {
  func.func @_stats_kernel(%arg0: i32, %arg1: memref<16x32xbf16, #tpu.memory_space<vmem>>, %arg2: memref<32x128xbf16, #tpu.memory_space<vmem>>, %arg3: memref<1x128xf32, #tpu.memory_space<vmem>>, %arg4: memref<1x128xf32, #tpu.memory_space<vmem>>, %arg5: memref<1x128xf32, #tpu.memory_space<vmem>>) attributes {dimension_semantics = [#tpu.dimension_semantics<arbitrary>], iteration_bounds = array<i64: 1>, scalar_prefetch = 0 : i64, scratch_operands = 0 : i64, tpu.core_type = #tpu.core_type<tc>, window_params = [{transform_indices = @transform_0, window_bounds = array<i64: 16, 32>}, {pipeline_mode = #tpu.pipeline_mode<synchronous>, transform_indices = @transform_1, window_bounds = array<i64: 32, 128>}, {pipeline_mode = #tpu.pipeline_mode<synchronous>, transform_indices = @transform_2, window_bounds = array<i64: 1, 128>}, {pipeline_mode = #tpu.pipeline_mode<synchronous>, transform_indices = @transform_3, window_bounds = array<i64: 1, 128>}, {pipeline_mode = #tpu.pipeline_mode<synchronous>, transform_indices = @transform_4, window_bounds = array<i64: 1, 128>}]} {
    %c0_i32 = arith.constant 0 : i32
    %0 = arith.cmpi eq, %arg0, %c0_i32 : i32
    %1 = arith.extui %0 : i1 to i32
    %c0_i32_0 = arith.constant 0 : i32
    %2 = arith.cmpi ne, %1, %c0_i32_0 : i32
    scf.if %2 {
      %cst_18 = arith.constant 0.000000e+00 : f32
      %23 = vector.broadcast %cst_18 : f32 to vector<1x128xf32>
      %c0_19 = arith.constant 0 : index
      %c0_20 = arith.constant 0 : index
      %24 = vector.load %arg4[%c0_19, %c0_20] : memref<1x128xf32, #tpu.memory_space<vmem>>, vector<1x128xf32>
      tpu.vector_store %arg4[%c0_19, %c0_20], %23 {strides = array<i32>} : memref<1x128xf32, #tpu.memory_space<vmem>>, vector<1x128xf32>,
      %cst_21 = arith.constant 0.000000e+00 : f32
      %25 = vector.broadcast %cst_21 : f32 to vector<1x128xf32>
      %c0_22 = arith.constant 0 : index
      %c0_23 = arith.constant 0 : index
      %26 = vector.load %arg5[%c0_22, %c0_23] : memref<1x128xf32, #tpu.memory_space<vmem>>, vector<1x128xf32>
      tpu.vector_store %arg5[%c0_22, %c0_23], %25 {strides = array<i32>} : memref<1x128xf32, #tpu.memory_space<vmem>>, vector<1x128xf32>,
    } else {
    }
    %c0 = arith.constant 0 : index
    %c0_1 = arith.constant 0 : index
    %3 = vector.load %arg1[%c0, %c0_1] : memref<16x32xbf16, #tpu.memory_space<vmem>>, vector<16x32xbf16>
    %c0_2 = arith.constant 0 : index
    %c0_3 = arith.constant 0 : index
    %4 = vector.load %arg2[%c0_2, %c0_3] : memref<32x128xbf16, #tpu.memory_space<vmem>>, vector<32x128xbf16>
    %cst = arith.constant dense<0.000000e+00> : vector<16x128xf32>
    %5 = tpu.matmul %3, %4, %cst {dimension_numbers = #tpu.dot_dimension_numbers<[1], [0], [0], [1], [0, 0, 1, 1], [], []>} : vector<16x32xbf16>, vector<32x128xbf16>, vector<16x128xf32> -> vector<16x128xf32>
    %c0_4 = arith.constant 0 : index
    %c0_5 = arith.constant 0 : index
    %6 = vector.load %arg3[%c0_4, %c0_5] : memref<1x128xf32, #tpu.memory_space<vmem>>, vector<1x128xf32>
    %7 = vector.broadcast %6 : vector<1x128xf32> to vector<16x128xf32>
    %8 = arith.addf %5, %7 : vector<16x128xf32>
    %c0_6 = arith.constant 0 : index
    %c0_7 = arith.constant 0 : index
    %9 = vector.load %arg4[%c0_6, %c0_7] : memref<1x128xf32, #tpu.memory_space<vmem>>, vector<1x128xf32>
    %cst_8 = arith.constant dense<0.000000e+00> : vector<128xf32>
    %10 = vector.multi_reduction <add>, %8, %cst_8 [0] : vector<16x128xf32> to vector<128xf32>
    %11 = vector.shape_cast %10 : vector<128xf32> to vector<1x128xf32>
    %12 = arith.addf %9, %11 : vector<1x128xf32>
    %c0_9 = arith.constant 0 : index
    %c0_10 = arith.constant 0 : index
    %13 = vector.load %arg4[%c0_9, %c0_10] : memref<1x128xf32, #tpu.memory_space<vmem>>, vector<1x128xf32>
    tpu.vector_store %arg4[%c0_9, %c0_10], %12 {strides = array<i32>} : memref<1x128xf32, #tpu.memory_space<vmem>>, vector<1x128xf32>,
    %c0_11 = arith.constant 0 : index
    %c0_12 = arith.constant 0 : index
    %14 = vector.load %arg5[%c0_11, %c0_12] : memref<1x128xf32, #tpu.memory_space<vmem>>, vector<1x128xf32>
    %15 = arith.mulf %8, %8 : vector<16x128xf32>
    %cst_13 = arith.constant dense<0.000000e+00> : vector<128xf32>
    %16 = vector.multi_reduction <add>, %15, %cst_13 [0] : vector<16x128xf32> to vector<128xf32>
    %17 = vector.shape_cast %16 : vector<128xf32> to vector<1x128xf32>
    %18 = arith.addf %14, %17 : vector<1x128xf32>
    %c0_14 = arith.constant 0 : index
    %c0_15 = arith.constant 0 : index
    %19 = vector.load %arg5[%c0_14, %c0_15] : memref<1x128xf32, #tpu.memory_space<vmem>>, vector<1x128xf32>
    tpu.vector_store %arg5[%c0_14, %c0_15], %18 {strides = array<i32>} : memref<1x128xf32, #tpu.memory_space<vmem>>, vector<1x128xf32>,
    %c0_i32_16 = arith.constant 0 : i32
    %20 = arith.cmpi eq, %arg0, %c0_i32_16 : i32
    %21 = arith.extui %20 : i1 to i32
    %c0_i32_17 = arith.constant 0 : i32
    %22 = arith.cmpi ne, %21, %c0_i32_17 : i32
    scf.if %22 {
      %c0_18 = arith.constant 0 : index
      %c0_19 = arith.constant 0 : index
      %23 = vector.load %arg4[%c0_18, %c0_19] : memref<1x128xf32, #tpu.memory_space<vmem>>, vector<1x128xf32>
      %cst_20 = arith.constant 6.250000e-02 : f32
      %24 = vector.broadcast %cst_20 : f32 to vector<1x128xf32>
      %25 = arith.mulf %23, %24 : vector<1x128xf32>
      %c0_21 = arith.constant 0 : index
      %c0_22 = arith.constant 0 : index
      %26 = vector.load %arg5[%c0_21, %c0_22] : memref<1x128xf32, #tpu.memory_space<vmem>>, vector<1x128xf32>
      %cst_23 = arith.constant 6.250000e-02 : f32
      %27 = vector.broadcast %cst_23 : f32 to vector<1x128xf32>
      %28 = arith.mulf %26, %27 : vector<1x128xf32>
      %29 = arith.mulf %25, %25 : vector<1x128xf32>
      %30 = arith.subf %28, %29 : vector<1x128xf32>
      %cst_24 = arith.constant 0.000000e+00 : f32
      %31 = vector.broadcast %cst_24 : f32 to vector<1x128xf32>
      %32 = arith.maximumf %30, %31 : vector<1x128xf32>
      %c0_25 = arith.constant 0 : index
      %c0_26 = arith.constant 0 : index
      %33 = vector.load %arg4[%c0_25, %c0_26] : memref<1x128xf32, #tpu.memory_space<vmem>>, vector<1x128xf32>
      tpu.vector_store %arg4[%c0_25, %c0_26], %25 {strides = array<i32>} : memref<1x128xf32, #tpu.memory_space<vmem>>, vector<1x128xf32>,
      %cst_27 = arith.constant 9.99999974E-6 : f32
      %34 = vector.broadcast %cst_27 : f32 to vector<1x128xf32>
      %35 = arith.addf %32, %34 : vector<1x128xf32>
      %36 = math.rsqrt %35 : vector<1x128xf32>
      %c0_28 = arith.constant 0 : index
      %c0_29 = arith.constant 0 : index
      %37 = vector.load %arg5[%c0_28, %c0_29] : memref<1x128xf32, #tpu.memory_space<vmem>>, vector<1x128xf32>
      tpu.vector_store %arg5[%c0_28, %c0_29], %36 {strides = array<i32>} : memref<1x128xf32, #tpu.memory_space<vmem>>, vector<1x128xf32>,
    } else {
    }
    return
  }
  func.func @transform_0(%arg0: i32) -> (i32, i32) {
    %c0_i32 = arith.constant 0 : i32
    %c0_i32_0 = arith.constant 0 : i32
    return %arg0, %c0_i32 : i32, i32
  }
  func.func @transform_1(%arg0: i32) -> (i32, i32) {
    %c0_i32 = arith.constant 0 : i32
    %c0_i32_0 = arith.constant 0 : i32
    %c0_i32_1 = arith.constant 0 : i32
    return %c0_i32, %c0_i32_0 : i32, i32
  }
  func.func @transform_2(%arg0: i32) -> (i32, i32) {
    %c0_i32 = arith.constant 0 : i32
    %c0_i32_0 = arith.constant 0 : i32
    %c0_i32_1 = arith.constant 0 : i32
    return %c0_i32, %c0_i32_0 : i32, i32
  }
  func.func @transform_3(%arg0: i32) -> (i32, i32) {
    %c0_i32 = arith.constant 0 : i32
    %c0_i32_0 = arith.constant 0 : i32
    %c0_i32_1 = arith.constant 0 : i32
    return %c0_i32, %c0_i32_0 : i32, i32
  }
  func.func @transform_4(%arg0: i32) -> (i32, i32) {
    %c0_i32 = arith.constant 0 : i32
    %c0_i32_0 = arith.constant 0 : i32
    %c0_i32_1 = arith.constant 0 : i32
    return %c0_i32, %c0_i32_0 : i32, i32
  }
}

</mosaic_0001>

<llo_original>
// kernel: tpu_custom_call.1
$region0: #{tpu_custom_call.1}
  #allocation0 [shape = 'u32[]', space=smem, size = 0x4, offset = 0x4, fixed_abs, tag = 'smem constant byte address 0x4 - core index']
  #allocation1 [shape = 'u32[144,128]{1,0:T(1,128)}', space=vmem, size = 0x12000, scoped, tag = 'internal scratch']
  %s0 = inlined_call_operand.hbm [shape: bf16[16,32], index: 0, kind: input, shape index: {}]
  %s1 = inlined_call_operand.hbm [shape: bf16[32,128], index: 1, kind: input, shape index: {}]
  %s2 = inlined_call_operand.vmem [shape: f32[1,128], index: 2, kind: input, shape index: {}]
  %s3 = inlined_call_operand.hbm [shape: f32[1,128], index: 3, kind: output, shape index: {0}]
  %s4 = inlined_call_operand.hbm [shape: f32[1,128], index: 4, kind: output, shape index: {1}]
  %5 = xla_tuple %s3, %s4
  %s6 = sld [smem:[#allocation0]]
  $region46: #{tpu_custom_call.1} parent=0
    _
  %s8 = ssub.s32 1, %s6
  %s9 = scalar_select 0, %s8, %s6
  $region1: #{tpu_custom_call.1} parent=0
    #allocation2 [shape = 'u8[4096]{0}', space=vmem, size = 0x1000, scoped, tag = 'input window, operand 0, single buffered']
    #allocation3 [shape = 's32[1]{0}', space=sflag, size = 0x4, scoped, tag = 'scoped memory for tpu_custom_call.1']
    #allocation4 [shape = 's32[1]{0}', space=sflag, size = 0x4, scoped, tag = 'scoped memory for tpu_custom_call.1']
    #allocation5 [shape = 'u8[8192]{0}', space=vmem, size = 0x2000, scoped, tag = 'input window, operand 1, single buffered']
    #allocation6 [shape = 's32[1]{0}', space=sflag, size = 0x4, scoped, tag = 'scoped memory for tpu_custom_call.1']
    #allocation7 [shape = 'u8[512]{0}', space=vmem, size = 0x400, scoped, tag = 'output window, operand 0, single buffered']
    #allocation8 [shape = 'u8[512]{0}', space=vmem, size = 0x400, scoped, tag = 'output window, operand 1, single buffered']
    #allocation9 [shape = 's32[1]{0}', space=sflag, size = 0x4, scoped, tag = 'scoped memory for tpu_custom_call.1']
    %10 = vsyncpa [#allocation3], 0
    %11 = vsyncpa [#allocation6], 0
    %12 = vsyncpa [#allocation4], 0
    %13 = vsyncpa [#allocation9], 0
    // Predicated region
    $region2: #{tpu_custom_call.1} parent=1 // pred_check
      _
    $region3: #{tpu_custom_call.1} parent=1 // pred_check_branch
      %15 = sbr.rel (0) target = $region5
    $region4: #{tpu_custom_call.1} parent=1 // pred_region
      %s17 = ssub.s32 128, 128
      %18 = vsyncadd [#allocation3], %s17
      %s19 = sshll.u32 [#allocation2], 4
      %s20 = int_to_ptr.vmem [resolvable:$true] %s19
      %25 = dma.hbm_to_vmem [thread:$0]  %s0, 128, %s20, [#allocation3], 64, 64, 4
    $region5: #{tpu_custom_call.1} parent=1 // pred_fallthru
      _
    // Predicated region
    $region6: #{tpu_custom_call.1} parent=1 // pred_check
      _
    $region7: #{tpu_custom_call.1} parent=1 // pred_check_branch
      %27 = sbr.rel (0) target = $region9
    $region8: #{tpu_custom_call.1} parent=1 // pred_region
      %s29 = ssub.s32 256, 256
      %30 = vsyncadd [#allocation6], %s29
      %s31 = sshll.u32 [#allocation5], 4
      %s32 = int_to_ptr.vmem [resolvable:$true] %s31
      %37 = dma.hbm_to_vmem [thread:$0]  %s1, 256, %s32, [#allocation6], 64, 64, 4
    $region9: #{tpu_custom_call.1} parent=1 // pred_fallthru
      _
    // Predicated region
    $region10: #{tpu_custom_call.1} parent=1 // pred_check
      _
    $region11: #{tpu_custom_call.1} parent=1 // pred_check_branch
      %39 = sbr.rel (0) target = $region13
    $region12: #{tpu_custom_call.1} parent=1 // pred_region
      _
    $region13: #{tpu_custom_call.1} parent=1 // pred_fallthru
      _
    // Predicated region
    $region14: #{tpu_custom_call.1} parent=1 // pred_check
      _
    $region15: #{tpu_custom_call.1} parent=1 // pred_check_branch
      %41 = sbr.rel (0) target = $region17
    $region16: #{tpu_custom_call.1} parent=1 // pred_region
      %42 = dma.done [#allocation3], 128
    $region17: #{tpu_custom_call.1} parent=1 // pred_fallthru
      _
    // Predicated region
    $region18: #{tpu_custom_call.1} parent=1 // pred_check
      _
    $region19: #{tpu_custom_call.1} parent=1 // pred_check_branch
      %44 = sbr.rel (0) target = $region21
    $region20: #{tpu_custom_call.1} parent=1 // pred_region
      %45 = dma.done [#allocation6], 256
    $region21: #{tpu_custom_call.1} parent=1 // pred_fallthru
      _
    %p47 = scmp.eq.s32.totalorder 0, 0
    // Predicated region
    $region22: #{tpu_custom_call.1} parent=1 // pred_check
      %p48 = pneg %p47
    $region23: #{tpu_custom_call.1} parent=1 // pred_check_branch
      %50 = sbr.rel (%p48) target = $region25
    $region24: #{tpu_custom_call.1} parent=1 // pred_region
      %51 = vst [vmem:[#allocation7] sm:$0x1] 0.0
      %52 = vst [vmem:[#allocation8] sm:$0x1] 0.0
    $region25: #{tpu_custom_call.1} parent=1 // pred_fallthru
      _
    %v53 = vld [vmem:[#allocation2] sm:$0xf]
    %v54 = vld [vmem:[#allocation2 + $0x4] sm:$0xf]
    %v55 = vld [vmem:[#allocation5] sm:$0xf]
    %v56 = vld [vmem:[#allocation5 + $0x4] sm:$0xf]
    %v57 = vld [vmem:[#allocation5 + $0x8] sm:$0xf]
    %v58 = vld [vmem:[#allocation5 + $0xc] sm:$0xf]
    %v59 = vld [vmem:[%s2] sm:$0x1]
    %v61 = vlaneseq
    %v62 = vshrl.u32 %v61, 7
    %v63 = vsub.s32 0, %v62
    %v64 = vrot.slane %v59, %v63
    %v68 = vunpack.c.l.b16 %v53
    %v69 = vunpack.c.l.b16 %v54
    %v70 = vpack.c.b16 %v69, %v68
    %v75 = vunpack.c.l.b16 %v55
    %v76 = vunpack.c.l.b16 %v56
    %v77 = vunpack.c.l.b16 %v57
    %v78 = vunpack.c.l.b16 %v58
    %v79 = vpack.c.b16 %v76, %v75
    %v80 = vpack.c.b16 %v78, %v77
    %vm83 = vcmask 261120
    %v85 = vsel %vm83, %v70, 0
    %87 = vmatprep.subr.bf16.mxu0 0
    %88 = vmatpush1.bf16.msra.mxu0 0
    %89 = vmatprep.subr.bf16.mxu0 0
    %90 = vmatpush1.bf16.msra.mxu0 0
    %91 = vmatprep.subr.bf16.mxu0 0
    %92 = vmatpush1.bf16.msra.mxu0 0
    %93 = vmatprep.subr.bf16.mxu0 0
    %94 = vmatpush1.bf16.msra.mxu0 0
    %95 = vmatprep.subr.bf16.mxu0 0
    %96 = vmatpush1.bf16.msra.mxu0 0
    %97 = vmatprep.subr.bf16.mxu0 0
    %98 = vmatpush1.bf16.msra.mxu0 0
    %99 = vmatprep.subr.bf16.mxu0 0
    %100 = vmatpush1.bf16.msra.mxu0 %v80
    %101 = vmatprep.subr.bf16.mxu0 0
    %102 = vmatpush1.bf16.msra.mxu0 %v79
    %103 = vmatprep.subr.bf16.mxu0 0
    %104 = vmatpush2.bf16.msra.mxu0 0
    %105 = vmatprep.subr.bf16.mxu0 0
    %106 = vmatpush2.bf16.msra.mxu0 0
    %107 = vmatprep.subr.bf16.mxu0 0
    %108 = vmatpush2.bf16.msra.mxu0 0
    %109 = vmatprep.subr.bf16.mxu0 0
    %110 = vmatpush2.bf16.msra.mxu0 0
    %111 = vmatprep.subr.bf16.mxu0 0
    %112 = vmatpush2.bf16.msra.mxu0 0
    %113 = vmatprep.subr.bf16.mxu0 0
    %114 = vmatpush2.bf16.msra.mxu0 0
    %115 = vmatprep.subr.bf16.mxu0 0
    %116 = vmatpush2.bf16.msra.mxu0 0
    %117 = vmatprep.subr.bf16.mxu0 0
    %118 = vmatpush2.bf16.msra.mxu0 0
    %119 = vmatprep.mubr.bf16.mxu0 0
    %120 = vmatmul.mubr.bf16.gmra.mxu0 %v85
    %v121 = vpop.f32.mrf.mxu0
    %v122 = vadd.f32 %v64, %v121
    %v123 = vpop.f32.mrf.mxu0
    %v124 = vpop.f32.mrf.mxu0
    %v125 = vadd.f32 %v64, %v124
    %v126 = vpop.f32.mrf.mxu0
    %127 = vdwg.mxu0
    %v128 = vld [vmem:[#allocation7] sm:$0x1]
    %v129 = vadd.f32 %v122, %v125
    %v130 = vrot.slane %v129, 4
    %v131 = vadd.f32 %v129, %v130
    %v132 = vrot.slane %v131, 2
    %v133 = vadd.f32 %v131, %v132
    %v134 = vrot.slane %v133, 1
    %v135 = vadd.f32 %v133, %v134
    %v136 = vadd.f32 %v128, %v135
    %137 = vst [vmem:[#allocation7] sm:$0x1] %v136
    %v138 = vld [vmem:[#allocation8] sm:$0x1]
    %v139 = vmul.f32 %v122, %v122
    %v140 = vmul.f32 %v125, %v125
    %v141 = vadd.f32 %v139, %v140
    %v142 = vrot.slane %v141, 4
    %v143 = vadd.f32 %v141, %v142
    %v144 = vrot.slane %v143, 2
    %v145 = vadd.f32 %v143, %v144
    %v146 = vrot.slane %v145, 1
    %v147 = vadd.f32 %v145, %v146
    %v148 = vadd.f32 %v138, %v147
    %149 = vst [vmem:[#allocation8] sm:$0x1] %v148
    // Predicated region
    $region26: #{tpu_custom_call.1} parent=1 // pred_check
      %p150 = pneg %p47
    $region27: #{tpu_custom_call.1} parent=1 // pred_check_branch
      %152 = sbr.rel (%p150) target = $region29
    $region28: #{tpu_custom_call.1} parent=1 // pred_region
      %v153 = vld [vmem:[#allocation7] sm:$0x1]
      %v154 = vmul.f32 %v153, 0.0625
      %v155 = vld [vmem:[#allocation8] sm:$0x1]
      %v156 = vmul.f32 %v155, 0.0625
      %v157 = vmul.f32 %v154, %v154
      %v158 = vsub.f32 %v156, %v157
      %v159 = vmax.f32 %v158, 0.0
      %160 = vst [vmem:[#allocation7] sm:$0x1] %v154
      %v161 = vadd.f32 %v159, 1e-05
      %v162 = vrsqrt.pop %v161
      %163 = vst [vmem:[#allocation8] sm:$0x1] %v162
    $region29: #{tpu_custom_call.1} parent=1 // pred_fallthru
      _
    // Predicated region
    $region30: #{tpu_custom_call.1} parent=1 // pred_check
      _
    $region31: #{tpu_custom_call.1} parent=1 // pred_check_branch
      %165 = sbr.rel (0) target = $region33
    $region32: #{tpu_custom_call.1} parent=1 // pred_region
      %s167 = ssub.s32 16, 16
      %168 = vsyncadd [#allocation4], %s167
      %s170 = sshll.u32 [#allocation7], 4
      %s171 = int_to_ptr.vmem [resolvable:$true] %s170
      %173 = dma.vmem_to_hbm [thread:$0]  %s171, 16, %s3, [#allocation4]
    $region33: #{tpu_custom_call.1} parent=1 // pred_fallthru
      _
    // Predicated region
    $region34: #{tpu_custom_call.1} parent=1 // pred_check
      _
    $region35: #{tpu_custom_call.1} parent=1 // pred_check_branch
      %175 = sbr.rel (0) target = $region37
    $region36: #{tpu_custom_call.1} parent=1 // pred_region
      %s177 = ssub.s32 16, 16
      %178 = vsyncadd [#allocation9], %s177
      %s180 = sshll.u32 [#allocation8], 4
      %s181 = int_to_ptr.vmem [resolvable:$true] %s180
      %183 = dma.vmem_to_hbm [thread:$0]  %s181, 16, %s4, [#allocation9]
    $region37: #{tpu_custom_call.1} parent=1 // pred_fallthru
      _
    // Predicated region
    $region38: #{tpu_custom_call.1} parent=1 // pred_check
      _
    $region39: #{tpu_custom_call.1} parent=1 // pred_check_branch
      %185 = sbr.rel (0) target = $region41
    $region40: #{tpu_custom_call.1} parent=1 // pred_region
      %186 = dma.done [#allocation4], 16
    $region41: #{tpu_custom_call.1} parent=1 // pred_fallthru
      _
    // Predicated region
    $region42: #{tpu_custom_call.1} parent=1 // pred_check
      _
    $region43: #{tpu_custom_call.1} parent=1 // pred_check_branch
      %188 = sbr.rel (0) target = $region45
    $region44: #{tpu_custom_call.1} parent=1 // pred_region
      %189 = dma.done [#allocation9], 16
    $region45: #{tpu_custom_call.1} parent=1 // pred_fallthru
      _
    %190 = vsyncpa [#allocation3], 1
    %191 = vsyncpa [#allocation6], 1
    %192 = vsyncpa [#allocation4], 1
    %193 = vsyncpa [#allocation9], 1

</llo_original>
